<compile_context>
chip_gen: v7x
topology: tpu7x:2x2x1
jax: 0.10.0
libtpu: 0.0.40
codegen_flags: <defaults>
</compile_context>

<pallas_src>
import functools

import jax
import jax.numpy as jnp
from jax.experimental import pallas as pl
from jax.experimental.pallas import tpu as pltpu

ALPHA = 2.0
_LANES = 128
_SUBLANES = 8
_CHUNK_ROWS = 64   # rows per inner accumulation chunk (multiple of 8)


def _adj_mse_kernel(o_ref, l_ref, out_ref, *, rows_valid, tile_r, chunk_r, mask_rows):
    """Writes this tile's unscaled partial sum, folded onto an (8, 128) block."""
    t = pl.program_id(0)
    row0 = t * tile_r
    n_chunks = tile_r // chunk_r

    if mask_rows:
        row_iota = jax.lax.broadcasted_iota(jnp.int32, (chunk_r, 1), 0)

    def chunk_body(c, acc):
        start = pl.multiple_of(c * chunk_r, chunk_r)
        o = o_ref[pl.ds(start, chunk_r), :].astype(jnp.float32)
        lbl = l_ref[pl.ds(start, chunk_r), :].astype(jnp.float32)

        diff = o - lbl
        sq = diff * diff
        prod = o * lbl
        # adj in {1/alpha, alpha, prod}; the prod else-branch keeps the adj==0 /
        # NaN behaviour of PyTorch's in-place masking.  Single multiply after.
        adj = jnp.where(prod > 0, jnp.float32(1.0 / ALPHA),
                        jnp.where(prod < 0, jnp.float32(ALPHA), prod))
        loss = sq * adj

        if mask_rows:
            # Zero rows past the true row count (only the last, partial tile).
            valid = (row0 + start + row_iota) < rows_valid
            loss = jnp.where(valid, loss, 0.0)

        # Fold (chunk_r, 128) onto (8, 128) with pure vreg-wise VPU adds.
        folded = loss.reshape(chunk_r // _SUBLANES, _SUBLANES, _LANES).sum(axis=0)
        return acc + folded

    acc = jax.lax.fori_loop(0, n_chunks, chunk_body,
                            jnp.zeros((_SUBLANES, _LANES), jnp.float32),
                            unroll=True)
    out_ref[...] = acc[None, :, :]


def _elementwise_loss(o, lbl):
    """Plain-JAX per-element loss*adj (used for fast path / tail / reference)."""
    o = o.astype(jnp.float32)
    lbl = lbl.astype(jnp.float32)
    sq = (o - lbl) ** 2
    prod = o * lbl
    adj = jnp.where(prod > 0, 1.0 / ALPHA, jnp.where(prod < 0, ALPHA, prod))
    return sq * adj


def adj_mse_loss1(outputs, labels, *, max_tile_rows=2048):
    """Pallas implementation of AdjMSELoss1.forward. Returns a scalar f32 loss."""
    o = jnp.squeeze(outputs).reshape(-1)
    lbl = jnp.squeeze(labels).reshape(-1)
    assert o.size == lbl.size, "squeezed outputs/labels must have the same size"
    n = o.size

    # Small-N fast path: pallas_call launch overhead exceeds the work.
    if n < _CHUNK_ROWS * _LANES:
        return jnp.mean(_elementwise_loss(o, lbl))

    main_n = (n // _LANES) * _LANES
    rem = n - main_n
    rows = main_n // _LANES

    if rem:
        # <128-element tail handled as a tiny scalar correction below.
        o_main, l_main = o[:main_n], lbl[:main_n]
    else:
        o_main, l_main = o, lbl           # reshape below is a free bitcast

    o2 = o_main.reshape(rows, _LANES)     # input dtype preserved (bf16 ok)
    l2 = l_main.reshape(rows, _LANES)

    max_tile_rows = max(_CHUNK_ROWS, (max_tile_rows // _CHUNK_ROWS) * _CHUNK_ROWS)
    tile_r = min(max_tile_rows, _CHUNK_ROWS * pl.cdiv(rows, _CHUNK_ROWS))
    num_tiles = pl.cdiv(rows, tile_r)
    mask_rows = (rows % tile_r) != 0

    kernel = functools.partial(
        _adj_mse_kernel, rows_valid=rows, tile_r=tile_r,
        chunk_r=_CHUNK_ROWS, mask_rows=mask_rows)

    bytes_accessed = (o2.size * o2.dtype.itemsize + l2.size * l2.dtype.itemsize
                      + num_tiles * _SUBLANES * _LANES * 4)

    partials = pl.pallas_call(
        kernel,
        out_shape=jax.ShapeDtypeStruct((num_tiles, _SUBLANES, _LANES), jnp.float32),
        grid_spec=pltpu.PrefetchScalarGridSpec(
            num_scalar_prefetch=0,
            grid=(num_tiles,),
            in_specs=[
                pl.BlockSpec((tile_r, _LANES), lambda i: (i, 0)),
                pl.BlockSpec((tile_r, _LANES), lambda i: (i, 0)),
            ],
            out_specs=pl.BlockSpec((1, _SUBLANES, _LANES), lambda i: (i, 0, 0)),
        ),
        compiler_params=pltpu.CompilerParams(
            dimension_semantics=("parallel",),
            vmem_limit_bytes=32 * 1024 * 1024),
        cost_estimate=pl.CostEstimate(
            flops=8 * main_n, transcendentals=0, bytes_accessed=bytes_accessed),
    )(o2, l2)

    total = jnp.sum(partials)
    if rem:
        total = total + jnp.sum(_elementwise_loss(o[main_n:], lbl[main_n:]))
    return total / jnp.float32(n)


def _reference(outputs, labels):
    return jnp.mean(_elementwise_loss(jnp.squeeze(outputs), jnp.squeeze(labels)))


if __name__ == "__main__":
    key = jax.random.PRNGKey(0)
    ks = jax.random.split(key, 10)

    # Case 1: N multiple of 128 (free bitcast reshape, no masking, no tail).
    N1 = 16384
    out1 = jax.random.normal(ks[0], (N1, 1), dtype=jnp.float32)
    lab1 = jax.random.normal(ks[1], (N1,), dtype=jnp.float32)
    loss1 = adj_mse_loss1(out1, lab1)
    jax.block_until_ready(loss1)
    ref1 = _reference(out1, lab1)
    assert jnp.allclose(loss1, ref1, rtol=1e-5, atol=1e-6), (loss1, ref1)

    # Case 2: rows not a multiple of the chunk size -> in-kernel row masking.
    N2 = 16000                       # = 125 * 128, rows=125
    out2 = jax.random.normal(ks[2], (N2, 1), dtype=jnp.float32)
    lab2 = jax.random.normal(ks[3], (N2,), dtype=jnp.float32)
    loss2 = adj_mse_loss1(out2, lab2)
    jax.block_until_ready(loss2)
    ref2 = _reference(out2, lab2)
    assert jnp.allclose(loss2, ref2, rtol=1e-5, atol=1e-6), (loss2, ref2)

    # Case 3: multi-tile grid + ragged N (masking + <128-element tail correction).
    N3 = 50000
    out3 = jax.random.normal(ks[4], (N3, 1), dtype=jnp.float32)
    lab3 = jax.random.normal(ks[5], (N3,), dtype=jnp.float32)
    loss3 = adj_mse_loss1(out3, lab3, max_tile_rows=128)
    jax.block_until_ready(loss3)
    ref3 = _reference(out3, lab3)
    assert jnp.allclose(loss3, ref3, rtol=1e-5, atol=1e-6), (loss3, ref3)

    # Case 4: bf16 inputs stream at half the HBM bytes; f32 accumulation inside.
    out4 = jax.random.normal(ks[6], (N1, 1), dtype=jnp.bfloat16)
    lab4 = jax.random.normal(ks[7], (N1,), dtype=jnp.bfloat16)
    loss4 = adj_mse_loss1(out4, lab4)
    jax.block_until_ready(loss4)
    ref4 = _reference(out4, lab4)
    assert jnp.allclose(loss4, ref4, rtol=1e-5, atol=1e-6), (loss4, ref4)

    # Case 5: tiny N -> small-N fast path (no pallas_call).
    N5 = 100
    out5 = jax.random.normal(ks[8], (N5, 1), dtype=jnp.float32)
    lab5 = jax.random.normal(ks[9], (N5,), dtype=jnp.float32)
    loss5 = adj_mse_loss1(out5, lab5)
    jax.block_until_ready(loss5)
    ref5 = _reference(out5, lab5)
    assert jnp.allclose(loss5, ref5, rtol=1e-5, atol=1e-6), (loss5, ref5)

    print("KERNEL_OK")
</pallas_src>

<mosaic_0001>
module attributes {stable_mosaic.version = 11 : i64} {
  func.func @_adj_mse_kernel(%arg0: i32, %arg1: memref<128x128xf32, #tpu.memory_space<vmem>>, %arg2: memref<128x128xf32, #tpu.memory_space<vmem>>, %arg3: memref<1x8x128xf32, #tpu.memory_space<vmem>>) attributes {dimension_semantics = [#tpu.dimension_semantics<parallel>], iteration_bounds = array<i64: 1>, scalar_prefetch = 0 : i64, scratch_operands = 0 : i64, tpu.core_type = #tpu.core_type<tc>, window_params = [{transform_indices = @transform_0, window_bounds = array<i64: 128, 128>}, {transform_indices = @transform_1, window_bounds = array<i64: 128, 128>}, {transform_indices = @transform_2, window_bounds = array<i64: 1, 8, 128>}]} {
    %cst = arith.constant 0.000000e+00 : f32
    %0 = vector.broadcast %cst : f32 to vector<8x128xf32>
    %c0_i32 = arith.constant 0 : i32
    %c64_i32 = arith.constant 64 : i32
    %1 = arith.muli %c0_i32, %c64_i32 : i32
    %2 = tpu.assume_multiple %1, 64 : i32
    %3 = arith.index_cast %2 : i32 to index
    %c0 = arith.constant 0 : index
    %4 = vector.load %arg1[%3, %c0] : memref<128x128xf32, #tpu.memory_space<vmem>>, vector<64x128xf32>
    %5 = arith.index_cast %2 : i32 to index
    %c0_0 = arith.constant 0 : index
    %6 = vector.load %arg2[%5, %c0_0] : memref<128x128xf32, #tpu.memory_space<vmem>>, vector<64x128xf32>
    %7 = arith.subf %4, %6 : vector<64x128xf32>
    %8 = arith.mulf %7, %7 : vector<64x128xf32>
    %9 = arith.mulf %4, %6 : vector<64x128xf32>
    %cst_1 = arith.constant 0.000000e+00 : f32
    %10 = vector.broadcast %cst_1 : f32 to vector<64x128xf32>
    %11 = arith.cmpf ogt, %9, %10 : vector<64x128xf32>
    %cst_2 = arith.constant 0.000000e+00 : f32
    %12 = vector.broadcast %cst_2 : f32 to vector<64x128xf32>
    %13 = arith.cmpf olt, %9, %12 : vector<64x128xf32>
    %cst_3 = arith.constant 2.000000e+00 : f32
    %14 = vector.broadcast %cst_3 : f32 to vector<64x128xf32>
    %15 = arith.select %13, %14, %9 : vector<64x128xi1>, vector<64x128xf32>
    %cst_4 = arith.constant 5.000000e-01 : f32
    %16 = vector.broadcast %cst_4 : f32 to vector<64x128xf32>
    %17 = arith.select %11, %16, %15 : vector<64x128xi1>, vector<64x128xf32>
    %18 = arith.mulf %8, %17 : vector<64x128xf32>
    %19 = vector.shape_cast %18 : vector<64x128xf32> to vector<8x8x128xf32>
    %cst_5 = arith.constant dense<0.000000e+00> : vector<8x128xf32>
    %20 = vector.multi_reduction <add>, %19, %cst_5 [0] : vector<8x8x128xf32> to vector<8x128xf32>
    %21 = arith.addf %0, %20 : vector<8x128xf32>
    %c1_i32 = arith.constant 1 : i32
    %c64_i32_6 = arith.constant 64 : i32
    %22 = arith.muli %c1_i32, %c64_i32_6 : i32
    %23 = tpu.assume_multiple %22, 64 : i32
    %24 = arith.index_cast %23 : i32 to index
    %c0_7 = arith.constant 0 : index
    %25 = vector.load %arg1[%24, %c0_7] : memref<128x128xf32, #tpu.memory_space<vmem>>, vector<64x128xf32>
    %26 = arith.index_cast %23 : i32 to index
    %c0_8 = arith.constant 0 : index
    %27 = vector.load %arg2[%26, %c0_8] : memref<128x128xf32, #tpu.memory_space<vmem>>, vector<64x128xf32>
    %28 = arith.subf %25, %27 : vector<64x128xf32>
    %29 = arith.mulf %28, %28 : vector<64x128xf32>
    %30 = arith.mulf %25, %27 : vector<64x128xf32>
    %cst_9 = arith.constant 0.000000e+00 : f32
    %31 = vector.broadcast %cst_9 : f32 to vector<64x128xf32>
    %32 = arith.cmpf ogt, %30, %31 : vector<64x128xf32>
    %cst_10 = arith.constant 0.000000e+00 : f32
    %33 = vector.broadcast %cst_10 : f32 to vector<64x128xf32>
    %34 = arith.cmpf olt, %30, %33 : vector<64x128xf32>
    %cst_11 = arith.constant 2.000000e+00 : f32
    %35 = vector.broadcast %cst_11 : f32 to vector<64x128xf32>
    %36 = arith.select %34, %35, %30 : vector<64x128xi1>, vector<64x128xf32>
    %cst_12 = arith.constant 5.000000e-01 : f32
    %37 = vector.broadcast %cst_12 : f32 to vector<64x128xf32>
    %38 = arith.select %32, %37, %36 : vector<64x128xi1>, vector<64x128xf32>
    %39 = arith.mulf %29, %38 : vector<64x128xf32>
    %40 = vector.shape_cast %39 : vector<64x128xf32> to vector<8x8x128xf32>
    %cst_13 = arith.constant dense<0.000000e+00> : vector<8x128xf32>
    %41 = vector.multi_reduction <add>, %40, %cst_13 [0] : vector<8x8x128xf32> to vector<8x128xf32>
    %42 = arith.addf %21, %41 : vector<8x128xf32>
    %c2_i32 = arith.constant 2 : i32
    %43 = vector.shape_cast %42 : vector<8x128xf32> to vector<1x8x128xf32>
    %c0_14 = arith.constant 0 : index
    %c0_15 = arith.constant 0 : index
    %c0_16 = arith.constant 0 : index
    %44 = vector.load %arg3[%c0_14, %c0_15, %c0_16] : memref<1x8x128xf32, #tpu.memory_space<vmem>>, vector<1x8x128xf32>
    tpu.vector_store %arg3[%c0_14, %c0_15, %c0_16], %43 {strides = array<i32>} : memref<1x8x128xf32, #tpu.memory_space<vmem>>, vector<1x8x128xf32>,
    return
  }
  func.func @transform_0(%arg0: i32) -> (i32, i32) {
    %c0_i32 = arith.constant 0 : i32
    %c0_i32_0 = arith.constant 0 : i32
    return %arg0, %c0_i32 : i32, i32
  }
  func.func @transform_1(%arg0: i32) -> (i32, i32) {
    %c0_i32 = arith.constant 0 : i32
    %c0_i32_0 = arith.constant 0 : i32
    return %arg0, %c0_i32 : i32, i32
  }
  func.func @transform_2(%arg0: i32) -> (i32, i32, i32) {
    %c0_i32 = arith.constant 0 : i32
    %c0_i32_0 = arith.constant 0 : i32
    %c0_i32_1 = arith.constant 0 : i32
    return %arg0, %c0_i32, %c0_i32_0 : i32, i32, i32
  }
}

</mosaic_0001>

<llo_original>
// kernel: tpu_custom_call.1
$region0: #{tpu_custom_call.1}
  #allocation0 [shape = 'u32[]', space=smem, size = 0x4, offset = 0x4, fixed_abs, tag = 'smem constant byte address 0x4 - core index']
  #allocation1 [shape = 'u32[144,128]{1,0:T(1,128)}', space=vmem, size = 0x12000, scoped, tag = 'internal scratch']
  %s0 = inlined_call_operand.hbm [shape: f32[128,128], index: 0, kind: input, shape index: {}]
  %s1 = inlined_call_operand.hbm [shape: f32[128,128], index: 1, kind: input, shape index: {}]
  %s2 = inlined_call_operand.hbm [shape: f32[1,8,128], index: 2, kind: output, shape index: {}]
  %s3 = sld [smem:[#allocation0]]
  $region26: #{tpu_custom_call.1} parent=0
    _
  %s5 = ssub.s32 1, %s3
  %s6 = scalar_select 0, %s5, %s3
  $region1: #{tpu_custom_call.1} parent=0
    #allocation2 [shape = 'u8[65536]{0}', space=vmem, size = 0x10000, scoped, tag = 'input window, operand 0, single buffered']
    #allocation3 [shape = 's32[1]{0}', space=sflag, size = 0x4, scoped, tag = 'scoped memory for tpu_custom_call.1']
    #allocation4 [shape = 's32[1]{0}', space=sflag, size = 0x4, scoped, tag = 'scoped memory for tpu_custom_call.1']
    #allocation5 [shape = 'u8[65536]{0}', space=vmem, size = 0x10000, scoped, tag = 'input window, operand 1, single buffered']
    #allocation6 [shape = 's32[1]{0}', space=sflag, size = 0x4, scoped, tag = 'scoped memory for tpu_custom_call.1']
    #allocation7 [shape = 'u8[4096]{0}', space=vmem, size = 0x1000, scoped, tag = 'output window, operand 0, single buffered']
    %7 = vsyncpa [#allocation3], 0
    %8 = vsyncpa [#allocation6], 0
    %9 = vsyncpa [#allocation4], 0
    // Predicated region
    $region2: #{tpu_custom_call.1} parent=1 // pred_check
      _
    $region3: #{tpu_custom_call.1} parent=1 // pred_check_branch
      %11 = sbr.rel (0) target = $region5
    $region4: #{tpu_custom_call.1} parent=1 // pred_region
      %s13 = ssub.s32 2048, 2048
      %14 = vsyncadd [#allocation3], %s13
      %s15 = sshll.u32 [#allocation2], 4
      %s16 = int_to_ptr.vmem [resolvable:$true] %s15
      %21 = dma.hbm_to_vmem [thread:$0]  %s0, 2048, %s16, [#allocation3], 128, 128, 8
    $region5: #{tpu_custom_call.1} parent=1 // pred_fallthru
      _
    // Predicated region
    $region6: #{tpu_custom_call.1} parent=1 // pred_check
      _
    $region7: #{tpu_custom_call.1} parent=1 // pred_check_branch
      %23 = sbr.rel (0) target = $region9
    $region8: #{tpu_custom_call.1} parent=1 // pred_region
      %s25 = ssub.s32 2048, 2048
      %26 = vsyncadd [#allocation6], %s25
      %s27 = sshll.u32 [#allocation5], 4
      %s28 = int_to_ptr.vmem [resolvable:$true] %s27
      %33 = dma.hbm_to_vmem [thread:$0]  %s1, 2048, %s28, [#allocation6], 128, 128, 8
    $region9: #{tpu_custom_call.1} parent=1 // pred_fallthru
      _
    // Predicated region
    $region10: #{tpu_custom_call.1} parent=1 // pred_check
      _
    $region11: #{tpu_custom_call.1} parent=1 // pred_check_branch
      %35 = sbr.rel (0) target = $region13
    $region12: #{tpu_custom_call.1} parent=1 // pred_region
      %36 = dma.done [#allocation3], 2048
    $region13: #{tpu_custom_call.1} parent=1 // pred_fallthru
      _
    // Predicated region
    $region14: #{tpu_custom_call.1} parent=1 // pred_check
      _
    $region15: #{tpu_custom_call.1} parent=1 // pred_check_branch
      %38 = sbr.rel (0) target = $region17
    $region16: #{tpu_custom_call.1} parent=1 // pred_region
      %39 = dma.done [#allocation6], 2048
    $region17: #{tpu_custom_call.1} parent=1 // pred_fallthru
      _
    %v40 = vld [vmem:[#allocation2] sm:$0xff]
    %v41 = vld [vmem:[#allocation2 + $0x8] sm:$0xff]
    %v42 = vld [vmem:[#allocation2 + $0x10] sm:$0xff]
    %v43 = vld [vmem:[#allocation2 + $0x18] sm:$0xff]
    %v44 = vld [vmem:[#allocation2 + $0x20] sm:$0xff]
    %v45 = vld [vmem:[#allocation2 + $0x28] sm:$0xff]
    %v46 = vld [vmem:[#allocation2 + $0x30] sm:$0xff]
    %v47 = vld [vmem:[#allocation2 + $0x38] sm:$0xff]
    %v48 = vld [vmem:[#allocation5] sm:$0xff]
    %v49 = vld [vmem:[#allocation5 + $0x8] sm:$0xff]
    %v50 = vld [vmem:[#allocation5 + $0x10] sm:$0xff]
    %v51 = vld [vmem:[#allocation5 + $0x18] sm:$0xff]
    %v52 = vld [vmem:[#allocation5 + $0x20] sm:$0xff]
    %v53 = vld [vmem:[#allocation5 + $0x28] sm:$0xff]
    %v54 = vld [vmem:[#allocation5 + $0x30] sm:$0xff]
    %v55 = vld [vmem:[#allocation5 + $0x38] sm:$0xff]
    %v56 = vsub.f32 %v40, %v48
    %v57 = vsub.f32 %v41, %v49
    %v58 = vsub.f32 %v42, %v50
    %v59 = vsub.f32 %v43, %v51
    %v60 = vsub.f32 %v44, %v52
    %v61 = vsub.f32 %v45, %v53
    %v62 = vsub.f32 %v46, %v54
    %v63 = vsub.f32 %v47, %v55
    %v64 = vmul.f32 %v56, %v56
    %v65 = vmul.f32 %v57, %v57
    %v66 = vmul.f32 %v58, %v58
    %v67 = vmul.f32 %v59, %v59
    %v68 = vmul.f32 %v60, %v60
    %v69 = vmul.f32 %v61, %v61
    %v70 = vmul.f32 %v62, %v62
    %v71 = vmul.f32 %v63, %v63
    %v72 = vmul.f32 %v40, %v48
    %v73 = vmul.f32 %v41, %v49
    %v74 = vmul.f32 %v42, %v50
    %v75 = vmul.f32 %v43, %v51
    %v76 = vmul.f32 %v44, %v52
    %v77 = vmul.f32 %v45, %v53
    %v78 = vmul.f32 %v46, %v54
    %v79 = vmul.f32 %v47, %v55
    %vm80 = vcmp.gt.f32.partialorder %v72, 0.0
    %vm81 = vcmp.gt.f32.partialorder %v73, 0.0
    %vm82 = vcmp.gt.f32.partialorder %v74, 0.0
    %vm83 = vcmp.gt.f32.partialorder %v75, 0.0
    %vm84 = vcmp.gt.f32.partialorder %v76, 0.0
    %vm85 = vcmp.gt.f32.partialorder %v77, 0.0
    %vm86 = vcmp.gt.f32.partialorder %v78, 0.0
    %vm87 = vcmp.gt.f32.partialorder %v79, 0.0
    %vm88 = vcmp.lt.f32.partialorder %v72, 0.0
    %vm89 = vcmp.lt.f32.partialorder %v73, 0.0
    %vm90 = vcmp.lt.f32.partialorder %v74, 0.0
    %vm91 = vcmp.lt.f32.partialorder %v75, 0.0
    %vm92 = vcmp.lt.f32.partialorder %v76, 0.0
    %vm93 = vcmp.lt.f32.partialorder %v77, 0.0
    %vm94 = vcmp.lt.f32.partialorder %v78, 0.0
    %vm95 = vcmp.lt.f32.partialorder %v79, 0.0
    %v96 = vsel %vm88, 2.0, %v72
    %v97 = vsel %vm89, 2.0, %v73
    %v98 = vsel %vm90, 2.0, %v74
    %v99 = vsel %vm91, 2.0, %v75
    %v100 = vsel %vm92, 2.0, %v76
    %v101 = vsel %vm93, 2.0, %v77
    %v102 = vsel %vm94, 2.0, %v78
    %v103 = vsel %vm95, 2.0, %v79
    %v104 = vsel %vm80, 0.5, %v96
    %v105 = vsel %vm81, 0.5, %v97
    %v106 = vsel %vm82, 0.5, %v98
    %v107 = vsel %vm83, 0.5, %v99
    %v108 = vsel %vm84, 0.5, %v100
    %v109 = vsel %vm85, 0.5, %v101
    %v110 = vsel %vm86, 0.5, %v102
    %v111 = vsel %vm87, 0.5, %v103
    %v112 = vmul.f32 %v64, %v104
    %v113 = vmul.f32 %v65, %v105
    %v114 = vmul.f32 %v66, %v106
    %v115 = vmul.f32 %v67, %v107
    %v116 = vmul.f32 %v68, %v108
    %v117 = vmul.f32 %v69, %v109
    %v118 = vmul.f32 %v70, %v110
    %v119 = vmul.f32 %v71, %v111
    %v120 = vadd.f32 %v112, %v113
    %v121 = vadd.f32 %v120, %v114
    %v122 = vadd.f32 %v121, %v115
    %v123 = vadd.f32 %v122, %v116
    %v124 = vadd.f32 %v123, %v117
    %v125 = vadd.f32 %v124, %v118
    %v126 = vadd.f32 %v125, %v119
    %v127 = vadd.f32 %v126, 0.0
    %s128 = scalar_lea.vmem [#allocation2], 64
    %v129 = vld [vmem:[%s128] sm:$0xff]
    %v130 = vld [vmem:[%s128 + $0x8] sm:$0xff]
    %v131 = vld [vmem:[%s128 + $0x10] sm:$0xff]
    %v132 = vld [vmem:[%s128 + $0x18] sm:$0xff]
    %v133 = vld [vmem:[%s128 + $0x20] sm:$0xff]
    %v134 = vld [vmem:[%s128 + $0x28] sm:$0xff]
    %v135 = vld [vmem:[%s128 + $0x30] sm:$0xff]
    %v136 = vld [vmem:[%s128 + $0x38] sm:$0xff]
    %s137 = scalar_lea.vmem [#allocation5], 64
    %v138 = vld [vmem:[%s137] sm:$0xff]
    %v139 = vld [vmem:[%s137 + $0x8] sm:$0xff]
    %v140 = vld [vmem:[%s137 + $0x10] sm:$0xff]
    %v141 = vld [vmem:[%s137 + $0x18] sm:$0xff]
    %v142 = vld [vmem:[%s137 + $0x20] sm:$0xff]
    %v143 = vld [vmem:[%s137 + $0x28] sm:$0xff]
    %v144 = vld [vmem:[%s137 + $0x30] sm:$0xff]
    %v145 = vld [vmem:[%s137 + $0x38] sm:$0xff]
    %v146 = vsub.f32 %v129, %v138
    %v147 = vsub.f32 %v130, %v139
    %v148 = vsub.f32 %v131, %v140
    %v149 = vsub.f32 %v132, %v141
    %v150 = vsub.f32 %v133, %v142
    %v151 = vsub.f32 %v134, %v143
    %v152 = vsub.f32 %v135, %v144
    %v153 = vsub.f32 %v136, %v145
    %v154 = vmul.f32 %v146, %v146
    %v155 = vmul.f32 %v147, %v147
    %v156 = vmul.f32 %v148, %v148
    %v157 = vmul.f32 %v149, %v149
    %v158 = vmul.f32 %v150, %v150
    %v159 = vmul.f32 %v151, %v151
    %v160 = vmul.f32 %v152, %v152
    %v161 = vmul.f32 %v153, %v153
    %v162 = vmul.f32 %v129, %v138
    %v163 = vmul.f32 %v130, %v139
    %v164 = vmul.f32 %v131, %v140
    %v165 = vmul.f32 %v132, %v141
    %v166 = vmul.f32 %v133, %v142
    %v167 = vmul.f32 %v134, %v143
    %v168 = vmul.f32 %v135, %v144
    %v169 = vmul.f32 %v136, %v145
    %vm170 = vcmp.gt.f32.partialorder %v162, 0.0
    %vm171 = vcmp.gt.f32.partialorder %v163, 0.0
    %vm172 = vcmp.gt.f32.partialorder %v164, 0.0
    %vm173 = vcmp.gt.f32.partialorder %v165, 0.0
    %vm174 = vcmp.gt.f32.partialorder %v166, 0.0
    %vm175 = vcmp.gt.f32.partialorder %v167, 0.0
    %vm176 = vcmp.gt.f32.partialorder %v168, 0.0
    %vm177 = vcmp.gt.f32.partialorder %v169, 0.0
    %vm178 = vcmp.lt.f32.partialorder %v162, 0.0
    %vm179 = vcmp.lt.f32.partialorder %v163, 0.0
    %vm180 = vcmp.lt.f32.partialorder %v164, 0.0
    %vm181 = vcmp.lt.f32.partialorder %v165, 0.0
    %vm182 = vcmp.lt.f32.partialorder %v166, 0.0
    %vm183 = vcmp.lt.f32.partialorder %v167, 0.0
    %vm184 = vcmp.lt.f32.partialorder %v168, 0.0
    %vm185 = vcmp.lt.f32.partialorder %v169, 0.0
    %v186 = vsel %vm178, 2.0, %v162
    %v187 = vsel %vm179, 2.0, %v163
    %v188 = vsel %vm180, 2.0, %v164
    %v189 = vsel %vm181, 2.0, %v165
    %v190 = vsel %vm182, 2.0, %v166
    %v191 = vsel %vm183, 2.0, %v167
    %v192 = vsel %vm184, 2.0, %v168
    %v193 = vsel %vm185, 2.0, %v169
    %v194 = vsel %vm170, 0.5, %v186
    %v195 = vsel %vm171, 0.5, %v187
    %v196 = vsel %vm172, 0.5, %v188
    %v197 = vsel %vm173, 0.5, %v189
    %v198 = vsel %vm174, 0.5, %v190
    %v199 = vsel %vm175, 0.5, %v191
    %v200 = vsel %vm176, 0.5, %v192
    %v201 = vsel %vm177, 0.5, %v193
    %v202 = vmul.f32 %v154, %v194
    %v203 = vmul.f32 %v155, %v195
    %v204 = vmul.f32 %v156, %v196
    %v205 = vmul.f32 %v157, %v197
    %v206 = vmul.f32 %v158, %v198
    %v207 = vmul.f32 %v159, %v199
    %v208 = vmul.f32 %v160, %v200
    %v209 = vmul.f32 %v161, %v201
    %v210 = vadd.f32 %v202, %v203
    %v211 = vadd.f32 %v210, %v204
    %v212 = vadd.f32 %v211, %v205
    %v213 = vadd.f32 %v212, %v206
    %v214 = vadd.f32 %v213, %v207
    %v215 = vadd.f32 %v214, %v208
    %v216 = vadd.f32 %v215, %v209
    %v217 = vadd.f32 %v127, %v216
    %218 = vst [vmem:[#allocation7] sm:$0xff] %v217
    // Predicated region
    $region18: #{tpu_custom_call.1} parent=1 // pred_check
      _
    $region19: #{tpu_custom_call.1} parent=1 // pred_check_branch
      %220 = sbr.rel (0) target = $region21
    $region20: #{tpu_custom_call.1} parent=1 // pred_region
      %s222 = ssub.s32 128, 128
      %223 = vsyncadd [#allocation4], %s222
      %s225 = sshll.u32 [#allocation7], 4
      %s226 = int_to_ptr.vmem [resolvable:$true] %s225
      %228 = dma.vmem_to_hbm [thread:$0]  %s226, 128, %s2, [#allocation4]
    $region21: #{tpu_custom_call.1} parent=1 // pred_fallthru
      _
    // Predicated region
    $region22: #{tpu_custom_call.1} parent=1 // pred_check
      _
    $region23: #{tpu_custom_call.1} parent=1 // pred_check_branch
      %230 = sbr.rel (0) target = $region25
    $region24: #{tpu_custom_call.1} parent=1 // pred_region
      %231 = dma.done [#allocation4], 128
    $region25: #{tpu_custom_call.1} parent=1 // pred_fallthru
      _
    %232 = vsyncpa [#allocation3], 1
    %233 = vsyncpa [#allocation6], 1
    %234 = vsyncpa [#allocation4], 1

</llo_original>
